<compile_context>
chip_gen: v7x
topology: tpu7x:2x2x1
jax: 0.10.0
libtpu: 0.0.40
codegen_flags: <defaults>
</compile_context>

<pallas_src>
import math

import jax
import jax.numpy as jnp
from jax.experimental import pallas as pl
from jax.experimental.pallas import tpu as pltpu


# ----------------------------------------------------------------------------
# helpers
# ----------------------------------------------------------------------------
def _round_up(x, m):
    return ((x + m - 1) // m) * m


def _vmem_limit_bytes():
    """Scoped-VMEM request derived from the chip's physical capacity."""
    cap = 64 << 20
    try:
        info = pltpu.get_tpu_info()
        cap = int(getattr(info, "vmem_capacity_bytes", cap))
    except Exception:
        pass
    # leave ~25% headroom for compiler-internal scratch / extra buffers
    return int(min(cap * 3 // 4, 96 << 20))


def _resident_weight_bytes(k_pad, hidden_pad, feat_pad, w_itemsize):
    # single-buffered resident weights + f32 biases; (1, N) bias blocks
    # occupy 8 sublanes in VMEM.
    return (w_itemsize * (k_pad * hidden_pad + hidden_pad * feat_pad)
            + 4 * 8 * (hidden_pad + feat_pad))


def _split_weight_block_bytes(k_pad, tile_h, feat_pad, w_itemsize):
    # double-buffered w1/b1/w2 blocks (they vary with the hidden grid axis)
    # + single-buffered b2.
    return (2 * w_itemsize * (k_pad * tile_h + tile_h * feat_pad)
            + 2 * 4 * 8 * tile_h + 4 * 8 * feat_pad)


def _choose_tile_h(hidden_pad, k_pad, feat_pad, w_itemsize, budget):
    """Keep all of hidden resident if its weights fit in ~1/3 of the budget;
    otherwise split hidden on a 128-multiple divisor of hidden_pad."""
    if _resident_weight_bytes(k_pad, hidden_pad, feat_pad, w_itemsize) <= budget // 3:
        return hidden_pad
    m = hidden_pad // 128
    for d in range(m, 0, -1):
        if m % d:
            continue
        th = 128 * d
        if th == hidden_pad:
            continue
        if _split_weight_block_bytes(k_pad, th, feat_pad, w_itemsize) <= budget // 3:
            return th
    return 128


def _choose_tile_b(batch, k_pad, tile_h, hidden_pad, feat_pad,
                   in_itemsize, out_itemsize, w_itemsize, budget):
    """Largest batch tile (multiple of 8) fitting the corrected VMEM model."""
    split = tile_h != hidden_pad
    if split:
        wbytes = _split_weight_block_bytes(k_pad, tile_h, feat_pad, w_itemsize)
        per_row = (2 * in_itemsize * k_pad            # double-buffered input tile
                   + 2 * out_itemsize * feat_pad      # double-buffered output tile
                   + 4 * tile_h                       # f32 hidden intermediate
                   + 4 * feat_pad)                    # f32 accumulator scratch
    else:
        wbytes = _resident_weight_bytes(k_pad, hidden_pad, feat_pad, w_itemsize)
        per_row = (2 * in_itemsize * k_pad
                   + 2 * out_itemsize * feat_pad
                   + 4 * hidden_pad)
    avail = max(budget - wbytes, per_row * 8)
    tile = 4096
    while tile > 8 and tile * per_row > avail:
        tile //= 2
    tile = max(tile, 8)
    tile = min(tile, _round_up(max(batch, 1), 8))
    if batch >= 16:
        # ensure >= 2 batch tiles so the "parallel" axis can split across
        # v7x's two TensorCores (one extra grid step is ~free on v5e/v6e).
        tile = min(tile, _round_up(-(-batch // 2), 8))
    return max(tile, 8)


# ----------------------------------------------------------------------------
# Pallas kernels: out = relu(x_comb @ W1 + b1) @ W2 + b2
# (timestep / condition already folded into x_comb's K columns)
# ----------------------------------------------------------------------------
def _mlp_kernel(x_ref, w1_ref, b1_ref, w2_ref, b2_ref, o_ref):
    h = jnp.dot(x_ref[...], w1_ref[...], preferred_element_type=jnp.float32)
    h = jnp.maximum(h + b1_ref[...], 0.0)                       # bias + ReLU in f32
    y = jnp.dot(h.astype(w2_ref.dtype), w2_ref[...],
                preferred_element_type=jnp.float32)
    o_ref[...] = (y + b2_ref[...]).astype(o_ref.dtype)


def _mlp_kernel_hsplit(x_ref, w1_ref, b1_ref, w2_ref, b2_ref, o_ref, acc_ref):
    hstep = pl.program_id(1)
    h = jnp.dot(x_ref[...], w1_ref[...], preferred_element_type=jnp.float32)
    h = jnp.maximum(h + b1_ref[...], 0.0)
    y = jnp.dot(h.astype(w2_ref.dtype), w2_ref[...],
                preferred_element_type=jnp.float32)

    @pl.when(hstep == 0)
    def _():
        acc_ref[...] = jnp.zeros_like(acc_ref)

    acc_ref[...] += y

    @pl.when(hstep == pl.num_programs(1) - 1)
    def _():
        o_ref[...] = (acc_ref[...] + b2_ref[...]).astype(o_ref.dtype)


def _denoiser_call(x_comb, w1, b1, w2, b2, feature_dim, out_dtype=jnp.float32):
    """x_comb: (B, K_pad) already lane-padded and cast to w1.dtype."""
    B, k_pad = x_comb.shape
    hidden_pad = w1.shape[1]
    feat_pad = w2.shape[1]
    w_itemsize = jnp.dtype(w1.dtype).itemsize
    in_itemsize = jnp.dtype(x_comb.dtype).itemsize
    out_itemsize = jnp.dtype(out_dtype).itemsize

    vmem_limit = _vmem_limit_bytes()
    tile_h = _choose_tile_h(hidden_pad, k_pad, feat_pad, w_itemsize, vmem_limit)
    tile_b = _choose_tile_b(B, k_pad, tile_h, hidden_pad, feat_pad,
                            in_itemsize, out_itemsize, w_itemsize, vmem_limit)
    b_pad = _round_up(B, tile_b)
    if b_pad != B:
        x_comb = jnp.pad(x_comb, ((0, b_pad - B), (0, 0)))
    n_b = b_pad // tile_b

    def _run(single_buffer_weights):
        def spec(shape, imap, resident=False):
            if resident and single_buffer_weights:
                # constant index map -> no point double-buffering; halves
                # weight VMEM residency.
                return pl.BlockSpec(shape, imap, pipeline_mode=pl.Buffered(1))
            return pl.BlockSpec(shape, imap)

        if tile_h == hidden_pad:
            grid = (n_b,)
            in_specs = [
                spec((tile_b, k_pad), lambda i: (i, 0)),
                spec((k_pad, hidden_pad), lambda i: (0, 0), resident=True),
                spec((1, hidden_pad), lambda i: (0, 0), resident=True),
                spec((hidden_pad, feat_pad), lambda i: (0, 0), resident=True),
                spec((1, feat_pad), lambda i: (0, 0), resident=True),
            ]
            out_specs = pl.BlockSpec((tile_b, feat_pad), lambda i: (i, 0))
            kernel = _mlp_kernel
            scratch_shapes = ()
            dim_sem = ("parallel",)
        else:
            n_h = hidden_pad // tile_h
            grid = (n_b, n_h)
            in_specs = [
                spec((tile_b, k_pad), lambda i, h: (i, 0)),
                spec((k_pad, tile_h), lambda i, h: (0, h)),
                spec((1, tile_h), lambda i, h: (0, h)),
                spec((tile_h, feat_pad), lambda i, h: (h, 0)),
                spec((1, feat_pad), lambda i, h: (0, 0), resident=True),
            ]
            out_specs = pl.BlockSpec((tile_b, feat_pad), lambda i, h: (i, 0))
            kernel = _mlp_kernel_hsplit
            scratch_shapes = (pltpu.VMEM((tile_b, feat_pad), jnp.float32),)
            dim_sem = ("parallel", "arbitrary")

        return pl.pallas_call(
            kernel,
            out_shape=jax.ShapeDtypeStruct((b_pad, feat_pad), out_dtype),
            grid=grid,
            in_specs=in_specs,
            out_specs=out_specs,
            scratch_shapes=scratch_shapes,
            compiler_params=pltpu.CompilerParams(
                dimension_semantics=dim_sem,
                vmem_limit_bytes=vmem_limit),
        )(x_comb, w1, b1, w2, b2)

    try:
        out = _run(True)
    except Exception:
        # fall back to default double-buffered specs if pl.Buffered(1) is
        # rejected by this jax/Mosaic version.
        out = _run(False)

    # NOTE: keep this slice (and the wrapper-side padding) inside the
    # caller's jit so XLA fuses it with the consumer instead of emitting a
    # standalone copy kernel.
    return out[:B, :feature_dim]


# ----------------------------------------------------------------------------
# Module wrapper
# ----------------------------------------------------------------------------
class FeatureDiffusion:
    def __init__(self, feature_dim, num_timesteps=100, hidden_dim=512,
                 condition_dim=None, key=None, param_dtype=jnp.bfloat16):
        self.feature_dim = feature_dim
        self.num_timesteps = num_timesteps
        self.condition_dim = condition_dim
        cd = condition_dim if condition_dim else 0
        input_dim = feature_dim + 1 + cd
        self.input_dim = input_dim
        self.hidden_dim = hidden_dim

        if key is None:
            key = jax.random.PRNGKey(0)
        k1, k2, k3, k4 = jax.random.split(key, 4)

        # nn.Linear init: U(-1/sqrt(fan_in), 1/sqrt(fan_in)), stored (in, out).
        bound1 = 1.0 / math.sqrt(input_dim)
        bound2 = 1.0 / math.sqrt(hidden_dim)
        w1_full = jax.random.uniform(k1, (input_dim, hidden_dim),
                                     jnp.float32, -bound1, bound1)
        b1_full = jax.random.uniform(k2, (hidden_dim,),
                                     jnp.float32, -bound1, bound1)
        w2_full = jax.random.uniform(k3, (hidden_dim, feature_dim),
                                     jnp.float32, -bound2, bound2)
        b2_full = jax.random.uniform(k4, (feature_dim,),
                                     jnp.float32, -bound2, bound2)

        # Pad K / hidden / feature dims to multiples of 128 (lane-dense MXU
        # tiles, unmasked vector stores).  Padded rows/cols are zero, exact.
        self.k_pad = _round_up(input_dim, 128)
        hidden_pad = _round_up(hidden_dim, 128)
        feat_pad = _round_up(feature_dim, 128)

        w1 = jnp.pad(w1_full, ((0, self.k_pad - input_dim),
                               (0, hidden_pad - hidden_dim)))
        b1 = jnp.pad(b1_full, (0, hidden_pad - hidden_dim))[None, :]
        w2 = jnp.pad(w2_full, ((0, hidden_pad - hidden_dim),
                               (0, feat_pad - feature_dim)))
        b2 = jnp.pad(b2_full, (0, feat_pad - feature_dim))[None, :]

        # bf16 weights hit MXU-native rate on v5e/v6e/v7x and halve weight
        # DMA / VMEM; accumulation stays f32 in the kernel.  Biases stay f32.
        self.w1 = w1.astype(param_dtype)
        self.b1 = b1.astype(jnp.float32)
        self.w2 = w2.astype(param_dtype)
        self.b2 = b2.astype(jnp.float32)

    def forward(self, noisy_feature, t, condition=None):
        x = jnp.asarray(noisy_feature)
        B = x.shape[0]
        cd = self.condition_dim if self.condition_dim else 0

        if isinstance(t, int):
            t_norm = jnp.full((B, 1), t / self.num_timesteps, dtype=jnp.float32)
        else:
            t = jnp.asarray(t)
            if t.ndim == 1:
                t = t[:, None]
            t_norm = t.astype(jnp.float32) / self.num_timesteps

        if condition is None and cd > 0:
            raise ValueError("model was built with condition_dim=%d but no "
                             "condition was passed" % cd)
        if condition is not None and cd == 0:
            raise ValueError("model was built without condition_dim but a "
                             "condition was passed")

        b1 = self.b1
        parts = [x.astype(jnp.float32), t_norm]
        if condition is not None:
            cond = jnp.asarray(condition)
            if cond.ndim == 1:
                cond = cond[None, :]
            if cond.shape[1] != cd:
                raise ValueError("condition has width %d, expected %d"
                                 % (cond.shape[1], cd))
            if cond.shape[0] == B:
                parts.append(cond.astype(jnp.float32))
            elif cond.shape[0] == 1:
                # Broadcast condition: fold cond @ W1_cond into the bias
                # instead of materializing B duplicated rows of HBM traffic.
                f = self.feature_dim
                w1c = self.w1[f + 1:f + 1 + cd].astype(jnp.float32)
                cond_q = cond.astype(self.w1.dtype).astype(jnp.float32)
                b1 = b1 + cond_q @ w1c
            else:
                raise ValueError("condition batch dim must be 1 or match "
                                 "noisy_feature's batch dim")

        # One lane-dense combined input slab [x | t | cond | 0-pad]; the MXU
        # pads K to 128 internally anyway, so the zero columns are free.
        x_comb = jnp.concatenate(parts, axis=1)
        if x_comb.shape[1] < self.k_pad:
            x_comb = jnp.pad(x_comb, ((0, 0), (0, self.k_pad - x_comb.shape[1])))
        x_comb = x_comb.astype(self.w1.dtype)

        return _denoiser_call(x_comb, self.w1, b1, self.w2, self.b2,
                              self.feature_dim)

    __call__ = forward

    def q_sample(self, x_start, t, noise=None, key=None):
        # TODO(synk): trivially element-wise; left in plain jnp (not worth a kernel).
        if noise is None:
            if key is None:
                key = jax.random.PRNGKey(1)
            noise = jax.random.normal(key, x_start.shape, x_start.dtype)
        beta = 0.02 + 0.98 * jnp.asarray(t, jnp.float32) / self.num_timesteps
        beta = beta.reshape(-1, 1)
        return jnp.sqrt(1.0 - beta) * x_start + jnp.sqrt(beta) * noise


# ----------------------------------------------------------------------------
# Pure-JAX reference (mirrors the kernel's dtype path) for sanity checks
# ----------------------------------------------------------------------------
def _reference(model, x, t_norm, cond=None):
    f = model.feature_dim
    pdt = model.w1.dtype
    hp = jax.lax.Precision.HIGHEST
    w1 = model.w1.astype(jnp.float32)
    xq = x.astype(pdt).astype(jnp.float32)
    tq = t_norm.astype(pdt).astype(jnp.float32)
    h = jnp.dot(xq, w1[:f], precision=hp) + jnp.dot(tq, w1[f:f + 1], precision=hp)
    if cond is not None:
        cd = model.condition_dim
        cq = cond.astype(pdt).astype(jnp.float32)
        h = h + jnp.dot(cq, w1[f + 1:f + 1 + cd], precision=hp)
    h = jnp.maximum(h + model.b1, 0.0)
    y = jnp.dot(h.astype(pdt).astype(jnp.float32),
                model.w2.astype(jnp.float32), precision=hp) + model.b2
    return y[:, :f]


if __name__ == "__main__":
    key = jax.random.PRNGKey(0)
    (k_feat, k_t, k_mod, k_cond, k_mod2, k_feat2, k_t2,
     k_feat3, k_t3, k_cond3) = jax.random.split(key, 10)

    num_timesteps = 100
    feature_dim, hidden_dim = 32, 64

    # --- case 1: f32 params, no condition, batch divisible by 8 -------------
    batch = 8
    model = FeatureDiffusion(feature_dim, num_timesteps=num_timesteps,
                             hidden_dim=hidden_dim, condition_dim=None,
                             key=k_mod, param_dtype=jnp.float32)
    noisy_feature = jax.random.normal(k_feat, (batch, feature_dim), jnp.float32)
    t = jax.random.randint(k_t, (batch,), 0, num_timesteps)

    out = jax.block_until_ready(model(noisy_feature, t))
    t_norm = (t.astype(jnp.float32) / num_timesteps)[:, None]
    ref = _reference(model, noisy_feature, t_norm)
    assert out.shape == (batch, feature_dim)
    assert jnp.allclose(out, ref, atol=1e-4, rtol=1e-4)

    # --- case 2: bf16 (default) params, per-row condition, ragged batch -----
    batch2, cond_dim = 10, 16
    model2 = FeatureDiffusion(feature_dim, num_timesteps=num_timesteps,
                              hidden_dim=hidden_dim, condition_dim=cond_dim,
                              key=k_mod2)
    nf2 = jax.random.normal(k_feat2, (batch2, feature_dim), jnp.float32)
    t2 = jax.random.randint(k_t2, (batch2,), 0, num_timesteps)
    cond2 = jax.random.normal(k_cond, (batch2, cond_dim), jnp.float32)

    out2 = jax.block_until_ready(model2(nf2, t2, cond2))
    t2_norm = (t2.astype(jnp.float32) / num_timesteps)[:, None]
    ref2 = _reference(model2, nf2, t2_norm, cond2)
    assert out2.shape == (batch2, feature_dim)
    assert jnp.allclose(out2, ref2, atol=2e-2, rtol=2e-2)

    # --- case 3: single-row condition (bias fold) + >=2 batch tiles ----------
    batch3 = 20
    nf3 = jax.random.normal(k_feat3, (batch3, feature_dim), jnp.float32)
    t3 = jax.random.randint(k_t3, (batch3,), 0, num_timesteps)
    cond3 = jax.random.normal(k_cond3, (cond_dim,), jnp.float32)   # 1-D -> expand

    out3 = jax.block_until_ready(model2(nf3, t3, cond3))
    t3_norm = (t3.astype(jnp.float32) / num_timesteps)[:, None]
    ref3 = _reference(model2, nf3, t3_norm,
                      jnp.broadcast_to(cond3[None, :], (batch3, cond_dim)))
    assert out3.shape == (batch3, feature_dim)
    assert jnp.allclose(out3, ref3, atol=2e-2, rtol=2e-2)

    # --- int timestep path (matches PyTorch isinstance(t, int) branch) ------
    out4 = jax.block_until_ready(model(noisy_feature, 7))
    assert out4.shape == (batch, feature_dim)

    # --- missing condition now errors instead of silently dropping it -------
    try:
        model2(nf2, t2)           # condition_dim set, condition=None
        raise AssertionError("expected ValueError for missing condition")
    except ValueError:
        pass

    print("KERNEL_OK")
</pallas_src>

<mosaic_0001>
module attributes {stable_mosaic.version = 11 : i64} {
  func.func @_mlp_kernel(%arg0: i32, %arg1: memref<8x128xf32, #tpu.memory_space<vmem>>, %arg2: memref<128x128xf32, #tpu.memory_space<vmem>>, %arg3: memref<1x128xf32, #tpu.memory_space<vmem>>, %arg4: memref<128x128xf32, #tpu.memory_space<vmem>>, %arg5: memref<1x128xf32, #tpu.memory_space<vmem>>, %arg6: memref<8x128xf32, #tpu.memory_space<vmem>>) attributes {dimension_semantics = [#tpu.dimension_semantics<parallel>], iteration_bounds = array<i64: 1>, scalar_prefetch = 0 : i64, scratch_operands = 0 : i64, tpu.core_type = #tpu.core_type<tc>, window_params = [{transform_indices = @transform_0, window_bounds = array<i64: 8, 128>}, {pipeline_mode = #tpu.pipeline_mode<synchronous>, transform_indices = @transform_1, window_bounds = array<i64: 128, 128>}, {pipeline_mode = #tpu.pipeline_mode<synchronous>, transform_indices = @transform_2, window_bounds = array<i64: 1, 128>}, {pipeline_mode = #tpu.pipeline_mode<synchronous>, transform_indices = @transform_3, window_bounds = array<i64: 128, 128>}, {pipeline_mode = #tpu.pipeline_mode<synchronous>, transform_indices = @transform_4, window_bounds = array<i64: 1, 128>}, {transform_indices = @transform_5, window_bounds = array<i64: 8, 128>}]} {
    %c0 = arith.constant 0 : index
    %c0_0 = arith.constant 0 : index
    %0 = vector.load %arg1[%c0, %c0_0] : memref<8x128xf32, #tpu.memory_space<vmem>>, vector<8x128xf32>
    %c0_1 = arith.constant 0 : index
    %c0_2 = arith.constant 0 : index
    %1 = vector.load %arg2[%c0_1, %c0_2] : memref<128x128xf32, #tpu.memory_space<vmem>>, vector<128x128xf32>
    %cst = arith.constant dense<0.000000e+00> : vector<8x128xf32>
    %2 = tpu.matmul %0, %1, %cst {dimension_numbers = #tpu.dot_dimension_numbers<[1], [0], [0], [1], [0, 0, 1, 1], [], []>} : vector<8x128xf32>, vector<128x128xf32>, vector<8x128xf32> -> vector<8x128xf32>
    %c0_3 = arith.constant 0 : index
    %c0_4 = arith.constant 0 : index
    %3 = vector.load %arg3[%c0_3, %c0_4] : memref<1x128xf32, #tpu.memory_space<vmem>>, vector<1x128xf32>
    %4 = vector.broadcast %3 : vector<1x128xf32> to vector<8x128xf32>
    %5 = arith.addf %2, %4 : vector<8x128xf32>
    %cst_5 = arith.constant 0.000000e+00 : f32
    %6 = vector.broadcast %cst_5 : f32 to vector<8x128xf32>
    %7 = arith.maximumf %5, %6 : vector<8x128xf32>
    %c0_6 = arith.constant 0 : index
    %c0_7 = arith.constant 0 : index
    %8 = vector.load %arg4[%c0_6, %c0_7] : memref<128x128xf32, #tpu.memory_space<vmem>>, vector<128x128xf32>
    %cst_8 = arith.constant dense<0.000000e+00> : vector<8x128xf32>
    %9 = tpu.matmul %7, %8, %cst_8 {dimension_numbers = #tpu.dot_dimension_numbers<[1], [0], [0], [1], [0, 0, 1, 1], [], []>} : vector<8x128xf32>, vector<128x128xf32>, vector<8x128xf32> -> vector<8x128xf32>
    %c0_9 = arith.constant 0 : index
    %c0_10 = arith.constant 0 : index
    %10 = vector.load %arg5[%c0_9, %c0_10] : memref<1x128xf32, #tpu.memory_space<vmem>>, vector<1x128xf32>
    %11 = vector.broadcast %10 : vector<1x128xf32> to vector<8x128xf32>
    %12 = arith.addf %9, %11 : vector<8x128xf32>
    %c0_11 = arith.constant 0 : index
    %c0_12 = arith.constant 0 : index
    %13 = vector.load %arg6[%c0_11, %c0_12] : memref<8x128xf32, #tpu.memory_space<vmem>>, vector<8x128xf32>
    tpu.vector_store %arg6[%c0_11, %c0_12], %12 {strides = array<i32>} : memref<8x128xf32, #tpu.memory_space<vmem>>, vector<8x128xf32>,
    return
  }
  func.func @transform_0(%arg0: i32) -> (i32, i32) {
    %c0_i32 = arith.constant 0 : i32
    %c0_i32_0 = arith.constant 0 : i32
    return %arg0, %c0_i32 : i32, i32
  }
  func.func @transform_1(%arg0: i32) -> (i32, i32) {
    %c0_i32 = arith.constant 0 : i32
    %c0_i32_0 = arith.constant 0 : i32
    %c0_i32_1 = arith.constant 0 : i32
    return %c0_i32, %c0_i32_0 : i32, i32
  }
  func.func @transform_2(%arg0: i32) -> (i32, i32) {
    %c0_i32 = arith.constant 0 : i32
    %c0_i32_0 = arith.constant 0 : i32
    %c0_i32_1 = arith.constant 0 : i32
    return %c0_i32, %c0_i32_0 : i32, i32
  }
  func.func @transform_3(%arg0: i32) -> (i32, i32) {
    %c0_i32 = arith.constant 0 : i32
    %c0_i32_0 = arith.constant 0 : i32
    %c0_i32_1 = arith.constant 0 : i32
    return %c0_i32, %c0_i32_0 : i32, i32
  }
  func.func @transform_4(%arg0: i32) -> (i32, i32) {
    %c0_i32 = arith.constant 0 : i32
    %c0_i32_0 = arith.constant 0 : i32
    %c0_i32_1 = arith.constant 0 : i32
    return %c0_i32, %c0_i32_0 : i32, i32
  }
  func.func @transform_5(%arg0: i32) -> (i32, i32) {
    %c0_i32 = arith.constant 0 : i32
    %c0_i32_0 = arith.constant 0 : i32
    return %arg0, %c0_i32 : i32, i32
  }
}

module attributes {stable_mosaic.version = 11 : i64} {
  func.func @_mlp_kernel(%arg0: i32, %arg1: memref<8x128xf32, #tpu.memory_space<vmem>>, %arg2: memref<128x128xf32, #tpu.memory_space<vmem>>, %arg3: memref<1x128xf32, #tpu.memory_space<vmem>>, %arg4: memref<128x128xf32, #tpu.memory_space<vmem>>, %arg5: memref<1x128xf32, #tpu.memory_space<vmem>>, %arg6: memref<8x128xf32, #tpu.memory_space<vmem>>) attributes {dimension_semantics = [#tpu.dimension_semantics<parallel>], iteration_bounds = array<i64: 1>, scalar_prefetch = 0 : i64, scratch_operands = 0 : i64, tpu.core_type = #tpu.core_type<tc>, window_params = [{transform_indices = @transform_0, window_bounds = array<i64: 8, 128>}, {pipeline_mode = #tpu.pipeline_mode<synchronous>, transform_indices = @transform_1, window_bounds = array<i64: 128, 128>}, {pipeline_mode = #tpu.pipeline_mode<synchronous>, transform_indices = @transform_2, window_bounds = array<i64: 1, 128>}, {pipeline_mode = #tpu.pipeline_mode<synchronous>, transform_indices = @transform_3, window_bounds = array<i64: 128, 128>}, {pipeline_mode = #tpu.pipeline_mode<synchronous>, transform_indices = @transform_4, window_bounds = array<i64: 1, 128>}, {transform_indices = @transform_5, window_bounds = array<i64: 8, 128>}]} {
    %c0 = arith.constant 0 : index
    %c0_0 = arith.constant 0 : index
    %0 = vector.load %arg1[%c0, %c0_0] : memref<8x128xf32, #tpu.memory_space<vmem>>, vector<8x128xf32>
    %c0_1 = arith.constant 0 : index
    %c0_2 = arith.constant 0 : index
    %1 = vector.load %arg2[%c0_1, %c0_2] : memref<128x128xf32, #tpu.memory_space<vmem>>, vector<128x128xf32>
    %cst = arith.constant dense<0.000000e+00> : vector<8x128xf32>
    %2 = tpu.matmul %0, %1, %cst {dimension_numbers = #tpu.dot_dimension_numbers<[1], [0], [0], [1], [0, 0, 1, 1], [], []>} : vector<8x128xf32>, vector<128x128xf32>, vector<8x128xf32> -> vector<8x128xf32>
    %c0_3 = arith.constant 0 : index
    %c0_4 = arith.constant 0 : index
    %3 = vector.load %arg3[%c0_3, %c0_4] : memref<1x128xf32, #tpu.memory_space<vmem>>, vector<1x128xf32>
    %4 = vector.broadcast %3 : vector<1x128xf32> to vector<8x128xf32>
    %5 = arith.addf %2, %4 : vector<8x128xf32>
    %cst_5 = arith.constant 0.000000e+00 : f32
    %6 = vector.broadcast %cst_5 : f32 to vector<8x128xf32>
    %7 = arith.maximumf %5, %6 : vector<8x128xf32>
    %c0_6 = arith.constant 0 : index
    %c0_7 = arith.constant 0 : index
    %8 = vector.load %arg4[%c0_6, %c0_7] : memref<128x128xf32, #tpu.memory_space<vmem>>, vector<128x128xf32>
    %cst_8 = arith.constant dense<0.000000e+00> : vector<8x128xf32>
    %9 = tpu.matmul %7, %8, %cst_8 {dimension_numbers = #tpu.dot_dimension_numbers<[1], [0], [0], [1], [0, 0, 1, 1], [], []>} : vector<8x128xf32>, vector<128x128xf32>, vector<8x128xf32> -> vector<8x128xf32>
    %c0_9 = arith.constant 0 : index
    %c0_10 = arith.constant 0 : index
    %10 = vector.load %arg5[%c0_9, %c0_10] : memref<1x128xf32, #tpu.memory_space<vmem>>, vector<1x128xf32>
    %11 = vector.broadcast %10 : vector<1x128xf32> to vector<8x128xf32>
    %12 = arith.addf %9, %11 : vector<8x128xf32>
    %c0_11 = arith.constant 0 : index
    %c0_12 = arith.constant 0 : index
    %13 = vector.load %arg6[%c0_11, %c0_12] : memref<8x128xf32, #tpu.memory_space<vmem>>, vector<8x128xf32>
    tpu.vector_store %arg6[%c0_11, %c0_12], %12 {strides = array<i32>} : memref<8x128xf32, #tpu.memory_space<vmem>>, vector<8x128xf32>,
    return
  }
  func.func @transform_0(%arg0: i32) -> (i32, i32) {
    %c0_i32 = arith.constant 0 : i32
    %c0_i32_0 = arith.constant 0 : i32
    return %arg0, %c0_i32 : i32, i32
  }
  func.func @transform_1(%arg0: i32) -> (i32, i32) {
    %c0_i32 = arith.constant 0 : i32
    %c0_i32_0 = arith.constant 0 : i32
    %c0_i32_1 = arith.constant 0 : i32
    return %c0_i32, %c0_i32_0 : i32, i32
  }
  func.func @transform_2(%arg0: i32) -> (i32, i32) {
    %c0_i32 = arith.constant 0 : i32
    %c0_i32_0 = arith.constant 0 : i32
    %c0_i32_1 = arith.constant 0 : i32
    return %c0_i32, %c0_i32_0 : i32, i32
  }
  func.func @transform_3(%arg0: i32) -> (i32, i32) {
    %c0_i32 = arith.constant 0 : i32
    %c0_i32_0 = arith.constant 0 : i32
    %c0_i32_1 = arith.constant 0 : i32
    return %c0_i32, %c0_i32_0 : i32, i32
  }
  func.func @transform_4(%arg0: i32) -> (i32, i32) {
    %c0_i32 = arith.constant 0 : i32
    %c0_i32_0 = arith.constant 0 : i32
    %c0_i32_1 = arith.constant 0 : i32
    return %c0_i32, %c0_i32_0 : i32, i32
  }
  func.func @transform_5(%arg0: i32) -> (i32, i32) {
    %c0_i32 = arith.constant 0 : i32
    %c0_i32_0 = arith.constant 0 : i32
    return %arg0, %c0_i32 : i32, i32
  }
}

</mosaic_0001>

<llo_original>
// kernel: tpu_custom_call.1
$region0: #{tpu_custom_call.1}
  #allocation0 [shape = 'u32[]', space=smem, size = 0x4, offset = 0x4, fixed_abs, tag = 'smem constant byte address 0x4 - core index']
  #allocation1 [shape = 'u32[144,128]{1,0:T(1,128)}', space=vmem, size = 0x12000, scoped, tag = 'internal scratch']
  %s0 = inlined_call_operand.hbm [shape: f32[8,128], index: 0, kind: input, shape index: {}]
  %s1 = inlined_call_operand.hbm [shape: f32[128,128], index: 1, kind: input, shape index: {}]
  %s2 = inlined_call_operand.vmem [shape: f32[1,128], index: 2, kind: input, shape index: {}]
  %s3 = inlined_call_operand.hbm [shape: f32[128,128], index: 3, kind: input, shape index: {}]
  %s4 = inlined_call_operand.vmem [shape: f32[1,128], index: 4, kind: input, shape index: {}]
  %s5 = inlined_call_operand.hbm [shape: f32[8,128], index: 5, kind: output, shape index: {}]
  %s6 = sld [smem:[#allocation0]]
  $region42: #{tpu_custom_call.1} parent=0
    _
  %s8 = ssub.s32 1, %s6
  %s9 = scalar_select 0, %s8, %s6
  $region1: #{tpu_custom_call.1} parent=0
    #allocation2 [shape = 'u8[4096]{0}', space=vmem, size = 0x1000, scoped, tag = 'input window, operand 0, single buffered']
    #allocation3 [shape = 's32[1]{0}', space=sflag, size = 0x4, scoped, tag = 'scoped memory for tpu_custom_call.1']
    #allocation4 [shape = 's32[1]{0}', space=sflag, size = 0x4, scoped, tag = 'scoped memory for tpu_custom_call.1']
    #allocation5 [shape = 'u8[65536]{0}', space=vmem, size = 0x10000, scoped, tag = 'input window, operand 1, single buffered']
    #allocation6 [shape = 's32[1]{0}', space=sflag, size = 0x4, scoped, tag = 'scoped memory for tpu_custom_call.1']
    #allocation7 [shape = 'u8[65536]{0}', space=vmem, size = 0x10000, scoped, tag = 'input window, operand 3, single buffered']
    #allocation8 [shape = 'u8[4096]{0}', space=vmem, size = 0x1000, scoped, tag = 'output window, operand 0, single buffered']
    %10 = vsyncpa [#allocation3], 0
    %11 = vsyncpa [#allocation6], 0
    %12 = vsyncpa [#allocation4], 0
    // Predicated region
    $region2: #{tpu_custom_call.1} parent=1 // pred_check
      _
    $region3: #{tpu_custom_call.1} parent=1 // pred_check_branch
      %14 = sbr.rel (0) target = $region5
    $region4: #{tpu_custom_call.1} parent=1 // pred_region
      %s16 = ssub.s32 128, 128
      %17 = vsyncadd [#allocation3], %s16
      %s19 = sshll.u32 [#allocation2], 4
      %s20 = int_to_ptr.vmem [resolvable:$true] %s19
      %22 = dma.hbm_to_vmem [thread:$0]  %s0, 128, %s20, [#allocation3]
    $region5: #{tpu_custom_call.1} parent=1 // pred_fallthru
      _
    // Predicated region
    $region6: #{tpu_custom_call.1} parent=1 // pred_check
      _
    $region7: #{tpu_custom_call.1} parent=1 // pred_check_branch
      %24 = sbr.rel (0) target = $region9
    $region8: #{tpu_custom_call.1} parent=1 // pred_region
      %s26 = ssub.s32 2048, 2048
      %27 = vsyncadd [#allocation6], %s26
      %s28 = sshll.u32 [#allocation5], 4
      %s29 = int_to_ptr.vmem [resolvable:$true] %s28
      %34 = dma.hbm_to_vmem [thread:$0]  %s1, 2048, %s29, [#allocation6], 128, 128, 8
    $region9: #{tpu_custom_call.1} parent=1 // pred_fallthru
      _
    // Predicated region
    $region10: #{tpu_custom_call.1} parent=1 // pred_check
      _
    $region11: #{tpu_custom_call.1} parent=1 // pred_check_branch
      %36 = sbr.rel (0) target = $region13
    $region12: #{tpu_custom_call.1} parent=1 // pred_region
      _
    $region13: #{tpu_custom_call.1} parent=1 // pred_fallthru
      _
    // Predicated region
    $region14: #{tpu_custom_call.1} parent=1 // pred_check
      _
    $region15: #{tpu_custom_call.1} parent=1 // pred_check_branch
      %38 = sbr.rel (0) target = $region17
    $region16: #{tpu_custom_call.1} parent=1 // pred_region
      %s40 = ssub.s32 2048, 2048
      %41 = vsyncadd [#allocation6], %s40
      %s42 = sshll.u32 [#allocation7], 4
      %s43 = int_to_ptr.vmem [resolvable:$true] %s42
      %48 = dma.hbm_to_vmem [thread:$0]  %s3, 2048, %s43, [#allocation6], 128, 128, 8
    $region17: #{tpu_custom_call.1} parent=1 // pred_fallthru
      _
    // Predicated region
    $region18: #{tpu_custom_call.1} parent=1 // pred_check
      _
    $region19: #{tpu_custom_call.1} parent=1 // pred_check_branch
      %50 = sbr.rel (0) target = $region21
    $region20: #{tpu_custom_call.1} parent=1 // pred_region
      _
    $region21: #{tpu_custom_call.1} parent=1 // pred_fallthru
      _
    // Predicated region
    $region22: #{tpu_custom_call.1} parent=1 // pred_check
      _
    $region23: #{tpu_custom_call.1} parent=1 // pred_check_branch
      %52 = sbr.rel (0) target = $region25
    $region24: #{tpu_custom_call.1} parent=1 // pred_region
      %53 = dma.done [#allocation3], 128
    $region25: #{tpu_custom_call.1} parent=1 // pred_fallthru
      _
    // Predicated region
    $region26: #{tpu_custom_call.1} parent=1 // pred_check
      _
    $region27: #{tpu_custom_call.1} parent=1 // pred_check_branch
      %55 = sbr.rel (0) target = $region29
    $region28: #{tpu_custom_call.1} parent=1 // pred_region
      %56 = dma.done [#allocation6], 2048
    $region29: #{tpu_custom_call.1} parent=1 // pred_fallthru
      _
    // Predicated region
    $region30: #{tpu_custom_call.1} parent=1 // pred_check
      _
    $region31: #{tpu_custom_call.1} parent=1 // pred_check_branch
      %58 = sbr.rel (0) target = $region33
    $region32: #{tpu_custom_call.1} parent=1 // pred_region
      %59 = dma.done [#allocation6], 2048
    $region33: #{tpu_custom_call.1} parent=1 // pred_fallthru
      _
    %v60 = vld [vmem:[#allocation2] sm:$0xff]
    %v61 = vld [vmem:[#allocation5] sm:$0xff]
    %v62 = vld [vmem:[#allocation5 + $0x8] sm:$0xff]
    %v63 = vld [vmem:[#allocation5 + $0x10] sm:$0xff]
    %v64 = vld [vmem:[#allocation5 + $0x18] sm:$0xff]
    %v65 = vld [vmem:[#allocation5 + $0x20] sm:$0xff]
    %v66 = vld [vmem:[#allocation5 + $0x28] sm:$0xff]
    %v67 = vld [vmem:[#allocation5 + $0x30] sm:$0xff]
    %v68 = vld [vmem:[#allocation5 + $0x38] sm:$0xff]
    %v69 = vld [vmem:[#allocation5 + $0x40] sm:$0xff]
    %v70 = vld [vmem:[#allocation5 + $0x48] sm:$0xff]
    %v71 = vld [vmem:[#allocation5 + $0x50] sm:$0xff]
    %v72 = vld [vmem:[#allocation5 + $0x58] sm:$0xff]
    %v73 = vld [vmem:[#allocation5 + $0x60] sm:$0xff]
    %v74 = vld [vmem:[#allocation5 + $0x68] sm:$0xff]
    %v75 = vld [vmem:[#allocation5 + $0x70] sm:$0xff]
    %v76 = vld [vmem:[#allocation5 + $0x78] sm:$0xff]
    %v77 = vld [vmem:[%s2] sm:$0x1]
    %v79 = vlaneseq
    %v80 = vshrl.u32 %v79, 7
    %v81 = vsub.s32 0, %v80
    %v82 = vrot.slane %v77, %v81
    %84 = vmatprep.subr.mxu0 0.0
    %85 = vmatpush1.msra.mxu0 %v61
    %86 = vmatprep.subr.mxu0 0.0
    %87 = vmatpush1.msra.mxu0 %v62
    %88 = vmatprep.subr.mxu0 0.0
    %89 = vmatpush1.msra.mxu0 %v63
    %90 = vmatprep.subr.mxu0 0.0
    %91 = vmatpush1.msra.mxu0 %v64
    %92 = vmatprep.subr.mxu0 0.0
    %93 = vmatpush1.msra.mxu0 %v65
    %94 = vmatprep.subr.mxu0 0.0
    %95 = vmatpush1.msra.mxu0 %v66
    %96 = vmatprep.subr.mxu0 0.0
    %97 = vmatpush1.msra.mxu0 %v67
    %98 = vmatprep.subr.mxu0 0.0
    %99 = vmatpush1.msra.mxu0 %v68
    %100 = vmatprep.subr.mxu0 0.0
    %101 = vmatpush1.msra.mxu0 %v69
    %102 = vmatprep.subr.mxu0 0.0
    %103 = vmatpush1.msra.mxu0 %v70
    %104 = vmatprep.subr.mxu0 0.0
    %105 = vmatpush1.msra.mxu0 %v71
    %106 = vmatprep.subr.mxu0 0.0
    %107 = vmatpush1.msra.mxu0 %v72
    %108 = vmatprep.subr.mxu0 0.0
    %109 = vmatpush1.msra.mxu0 %v73
    %110 = vmatprep.subr.mxu0 0.0
    %111 = vmatpush1.msra.mxu0 %v74
    %112 = vmatprep.subr.mxu0 0.0
    %113 = vmatpush1.msra.mxu0 %v75
    %114 = vmatprep.subr.mxu0 0.0
    %115 = vmatpush1.msra.mxu0 %v76
    %116 = vmatprep.subr.mxu0 0.0
    %117 = vmatpush1.msra.mxu0 0.0
    %118 = vmatprep.subr.mxu0 0.0
    %119 = vmatpush1.msra.mxu0 0.0
    %120 = vmatprep.subr.mxu0 0.0
    %121 = vmatpush1.msra.mxu0 0.0
    %122 = vmatprep.subr.mxu0 0.0
    %123 = vmatpush1.msra.mxu0 0.0
    %124 = vmatprep.subr.mxu0 0.0
    %125 = vmatpush1.msra.mxu0 0.0
    %126 = vmatprep.subr.mxu0 0.0
    %127 = vmatpush1.msra.mxu0 0.0
    %128 = vmatprep.subr.mxu0 0.0
    %129 = vmatpush1.msra.mxu0 0.0
    %130 = vmatprep.subr.mxu0 0.0
    %131 = vmatpush1.msra.mxu0 0.0
    %132 = vmatprep.subr.mxu0 0.0
    %133 = vmatpush1.msra.mxu0 0.0
    %134 = vmatprep.subr.mxu0 0.0
    %135 = vmatpush1.msra.mxu0 0.0
    %136 = vmatprep.subr.mxu0 0.0
    %137 = vmatpush1.msra.mxu0 0.0
    %138 = vmatprep.subr.mxu0 0.0
    %139 = vmatpush1.msra.mxu0 0.0
    %140 = vmatprep.subr.mxu0 0.0
    %141 = vmatpush1.msra.mxu0 0.0
    %142 = vmatprep.subr.mxu0 0.0
    %143 = vmatpush1.msra.mxu0 0.0
    %144 = vmatprep.subr.mxu0 0.0
    %145 = vmatpush1.msra.mxu0 0.0
    %146 = vmatprep.subr.mxu0 0.0
    %147 = vmatpush1.msra.mxu0 0.0
    %148 = vmatprep.mubr.f32.mxu0 0.0
    %149 = vmatmul.mubr.f32.gmra.mrb[0].mxu0 %v60
    %v150 = vpop.f32.mrb[0].mxu0
    %v151 = vadd.f32 %v82, %v150
    %v152 = vpop.f32.mrb[0].mxu0
    %153 = vdwg.mxu0
    %v154 = vmax.f32 %v151, 0.0
    %v155 = vld [vmem:[#allocation7] sm:$0xff]
    %v156 = vld [vmem:[#allocation7 + $0x8] sm:$0xff]
    %v157 = vld [vmem:[#allocation7 + $0x10] sm:$0xff]
    %v158 = vld [vmem:[#allocation7 + $0x18] sm:$0xff]
    %v159 = vld [vmem:[#allocation7 + $0x20] sm:$0xff]
    %v160 = vld [vmem:[#allocation7 + $0x28] sm:$0xff]
    %v161 = vld [vmem:[#allocation7 + $0x30] sm:$0xff]
    %v162 = vld [vmem:[#allocation7 + $0x38] sm:$0xff]
    %v163 = vld [vmem:[#allocation7 + $0x40] sm:$0xff]
    %v164 = vld [vmem:[#allocation7 + $0x48] sm:$0xff]
    %v165 = vld [vmem:[#allocation7 + $0x50] sm:$0xff]
    %v166 = vld [vmem:[#allocation7 + $0x58] sm:$0xff]
    %v167 = vld [vmem:[#allocation7 + $0x60] sm:$0xff]
    %v168 = vld [vmem:[#allocation7 + $0x68] sm:$0xff]
    %v169 = vld [vmem:[#allocation7 + $0x70] sm:$0xff]
    %v170 = vld [vmem:[#allocation7 + $0x78] sm:$0xff]
    %v171 = vld [vmem:[%s4] sm:$0x1]
    %v173 = vlaneseq
    %v174 = vshrl.u32 %v173, 7
    %v175 = vsub.s32 0, %v174
    %v176 = vrot.slane %v171, %v175
    %178 = vmatprep.subr.mxu0 0.0
    %179 = vmatpush1.msra.mxu0 %v155
    %180 = vmatprep.subr.mxu0 0.0
    %181 = vmatpush1.msra.mxu0 %v156
    %182 = vmatprep.subr.mxu0 0.0
    %183 = vmatpush1.msra.mxu0 %v157
    %184 = vmatprep.subr.mxu0 0.0
    %185 = vmatpush1.msra.mxu0 %v158
    %186 = vmatprep.subr.mxu0 0.0
    %187 = vmatpush1.msra.mxu0 %v159
    %188 = vmatprep.subr.mxu0 0.0
    %189 = vmatpush1.msra.mxu0 %v160
    %190 = vmatprep.subr.mxu0 0.0
    %191 = vmatpush1.msra.mxu0 %v161
    %192 = vmatprep.subr.mxu0 0.0
    %193 = vmatpush1.msra.mxu0 %v162
    %194 = vmatprep.subr.mxu0 0.0
    %195 = vmatpush1.msra.mxu0 %v163
    %196 = vmatprep.subr.mxu0 0.0
    %197 = vmatpush1.msra.mxu0 %v164
    %198 = vmatprep.subr.mxu0 0.0
    %199 = vmatpush1.msra.mxu0 %v165
    %200 = vmatprep.subr.mxu0 0.0
    %201 = vmatpush1.msra.mxu0 %v166
    %202 = vmatprep.subr.mxu0 0.0
    %203 = vmatpush1.msra.mxu0 %v167
    %204 = vmatprep.subr.mxu0 0.0
    %205 = vmatpush1.msra.mxu0 %v168
    %206 = vmatprep.subr.mxu0 0.0
    %207 = vmatpush1.msra.mxu0 %v169
    %208 = vmatprep.subr.mxu0 0.0
    %209 = vmatpush1.msra.mxu0 %v170
    %210 = vmatprep.subr.mxu0 0.0
    %211 = vmatpush1.msra.mxu0 0.0
    %212 = vmatprep.subr.mxu0 0.0
    %213 = vmatpush1.msra.mxu0 0.0
    %214 = vmatprep.subr.mxu0 0.0
    %215 = vmatpush1.msra.mxu0 0.0
    %216 = vmatprep.subr.mxu0 0.0
    %217 = vmatpush1.msra.mxu0 0.0
    %218 = vmatprep.subr.mxu0 0.0
    %219 = vmatpush1.msra.mxu0 0.0
    %220 = vmatprep.subr.mxu0 0.0
    %221 = vmatpush1.msra.mxu0 0.0
    %222 = vmatprep.subr.mxu0 0.0
    %223 = vmatpush1.msra.mxu0 0.0
    %224 = vmatprep.subr.mxu0 0.0
    %225 = vmatpush1.msra.mxu0 0.0
    %226 = vmatprep.subr.mxu0 0.0
    %227 = vmatpush1.msra.mxu0 0.0
    %228 = vmatprep.subr.mxu0 0.0
    %229 = vmatpush1.msra.mxu0 0.0
    %230 = vmatprep.subr.mxu0 0.0
    %231 = vmatpush1.msra.mxu0 0.0
    %232 = vmatprep.subr.mxu0 0.0
    %233 = vmatpush1.msra.mxu0 0.0
    %234 = vmatprep.subr.mxu0 0.0
    %235 = vmatpush1.msra.mxu0 0.0
    %236 = vmatprep.subr.mxu0 0.0
    %237 = vmatpush1.msra.mxu0 0.0
    %238 = vmatprep.subr.mxu0 0.0
    %239 = vmatpush1.msra.mxu0 0.0
    %240 = vmatprep.subr.mxu0 0.0
    %241 = vmatpush1.msra.mxu0 0.0
    %242 = vmatprep.mubr.f32.mxu0 0.0
    %243 = vmatmul.mubr.f32.gmra.mrb[0].mxu0 %v154
    %v244 = vpop.f32.mrb[0].mxu0
    %v245 = vadd.f32 %v176, %v244
    %v246 = vpop.f32.mrb[0].mxu0
    %247 = vdwg.mxu0
    %248 = vst [vmem:[#allocation8] sm:$0xff] %v245
    // Predicated region
    $region34: #{tpu_custom_call.1} parent=1 // pred_check
      _
    $region35: #{tpu_custom_call.1} parent=1 // pred_check_branch
      %250 = sbr.rel (0) target = $region37
    $region36: #{tpu_custom_call.1} parent=1 // pred_region
      %s252 = ssub.s32 128, 128
      %253 = vsyncadd [#allocation4], %s252
      %s255 = sshll.u32 [#allocation8], 4
      %s256 = int_to_ptr.vmem [resolvable:$true] %s255
      %258 = dma.vmem_to_hbm [thread:$0]  %s256, 128, %s5, [#allocation4]
    $region37: #{tpu_custom_call.1} parent=1 // pred_fallthru
      _
    // Predicated region
    $region38: #{tpu_custom_call.1} parent=1 // pred_check
      _
    $region39: #{tpu_custom_call.1} parent=1 // pred_check_branch
      %260 = sbr.rel (0) target = $region41
    $region40: #{tpu_custom_call.1} parent=1 // pred_region
      %261 = dma.done [#allocation4], 128
    $region41: #{tpu_custom_call.1} parent=1 // pred_fallthru
      _
    %262 = vsyncpa [#allocation3], 1
    %263 = vsyncpa [#allocation6], 1
    %264 = vsyncpa [#allocation4], 1

// kernel: tpu_custom_call.1
$region0: #{tpu_custom_call.1}
  #allocation0 [shape = 'u32[]', space=smem, size = 0x4, offset = 0x4, fixed_abs, tag = 'smem constant byte address 0x4 - core index']
  #allocation1 [shape = 'u32[144,128]{1,0:T(1,128)}', space=vmem, size = 0x12000, scoped, tag = 'internal scratch']
  %s0 = inlined_call_operand.hbm [shape: f32[8,128], index: 0, kind: input, shape index: {}]
  %s1 = inlined_call_operand.hbm [shape: f32[128,128], index: 1, kind: input, shape index: {}]
  %s2 = inlined_call_operand.vmem [shape: f32[1,128], index: 2, kind: input, shape index: {}]
  %s3 = inlined_call_operand.hbm [shape: f32[128,128], index: 3, kind: input, shape index: {}]
  %s4 = inlined_call_operand.vmem [shape: f32[1,128], index: 4, kind: input, shape index: {}]
  %s5 = inlined_call_operand.hbm [shape: f32[8,128], index: 5, kind: output, shape index: {}]
  %s6 = sld [smem:[#allocation0]]
  $region42: #{tpu_custom_call.1} parent=0
    _
  %s8 = ssub.s32 1, %s6
  %s9 = scalar_select 0, %s8, %s6
  $region1: #{tpu_custom_call.1} parent=0
    #allocation2 [shape = 'u8[4096]{0}', space=vmem, size = 0x1000, scoped, tag = 'input window, operand 0, single buffered']
    #allocation3 [shape = 's32[1]{0}', space=sflag, size = 0x4, scoped, tag = 'scoped memory for tpu_custom_call.1']
    #allocation4 [shape = 's32[1]{0}', space=sflag, size = 0x4, scoped, tag = 'scoped memory for tpu_custom_call.1']
    #allocation5 [shape = 'u8[65536]{0}', space=vmem, size = 0x10000, scoped, tag = 'input window, operand 1, single buffered']
    #allocation6 [shape = 's32[1]{0}', space=sflag, size = 0x4, scoped, tag = 'scoped memory for tpu_custom_call.1']
    #allocation7 [shape = 'u8[65536]{0}', space=vmem, size = 0x10000, scoped, tag = 'input window, operand 3, single buffered']
    #allocation8 [shape = 'u8[4096]{0}', space=vmem, size = 0x1000, scoped, tag = 'output window, operand 0, single buffered']
    %10 = vsyncpa [#allocation3], 0
    %11 = vsyncpa [#allocation6], 0
    %12 = vsyncpa [#allocation4], 0
    // Predicated region
    $region2: #{tpu_custom_call.1} parent=1 // pred_check
      _
    $region3: #{tpu_custom_call.1} parent=1 // pred_check_branch
      %14 = sbr.rel (0) target = $region5
    $region4: #{tpu_custom_call.1} parent=1 // pred_region
      %s16 = ssub.s32 128, 128
      %17 = vsyncadd [#allocation3], %s16
      %s19 = sshll.u32 [#allocation2], 4
      %s20 = int_to_ptr.vmem [resolvable:$true] %s19
      %22 = dma.hbm_to_vmem [thread:$0]  %s0, 128, %s20, [#allocation3]
    $region5: #{tpu_custom_call.1} parent=1 // pred_fallthru
      _
    // Predicated region
    $region6: #{tpu_custom_call.1} parent=1 // pred_check
      _
    $region7: #{tpu_custom_call.1} parent=1 // pred_check_branch
      %24 = sbr.rel (0) target = $region9
    $region8: #{tpu_custom_call.1} parent=1 // pred_region
      %s26 = ssub.s32 2048, 2048
      %27 = vsyncadd [#allocation6], %s26
      %s28 = sshll.u32 [#allocation5], 4
      %s29 = int_to_ptr.vmem [resolvable:$true] %s28
      %34 = dma.hbm_to_vmem [thread:$0]  %s1, 2048, %s29, [#allocation6], 128, 128, 8
    $region9: #{tpu_custom_call.1} parent=1 // pred_fallthru
      _
    // Predicated region
    $region10: #{tpu_custom_call.1} parent=1 // pred_check
      _
    $region11: #{tpu_custom_call.1} parent=1 // pred_check_branch
      %36 = sbr.rel (0) target = $region13
    $region12: #{tpu_custom_call.1} parent=1 // pred_region
      _
    $region13: #{tpu_custom_call.1} parent=1 // pred_fallthru
      _
    // Predicated region
    $region14: #{tpu_custom_call.1} parent=1 // pred_check
      _
    $region15: #{tpu_custom_call.1} parent=1 // pred_check_branch
      %38 = sbr.rel (0) target = $region17
    $region16: #{tpu_custom_call.1} parent=1 // pred_region
      %s40 = ssub.s32 2048, 2048
      %41 = vsyncadd [#allocation6], %s40
      %s42 = sshll.u32 [#allocation7], 4
      %s43 = int_to_ptr.vmem [resolvable:$true] %s42
      %48 = dma.hbm_to_vmem [thread:$0]  %s3, 2048, %s43, [#allocation6], 128, 128, 8
    $region17: #{tpu_custom_call.1} parent=1 // pred_fallthru
      _
    // Predicated region
    $region18: #{tpu_custom_call.1} parent=1 // pred_check
      _
    $region19: #{tpu_custom_call.1} parent=1 // pred_check_branch
      %50 = sbr.rel (0) target = $region21
    $region20: #{tpu_custom_call.1} parent=1 // pred_region
      _
    $region21: #{tpu_custom_call.1} parent=1 // pred_fallthru
      _
    // Predicated region
    $region22: #{tpu_custom_call.1} parent=1 // pred_check
      _
    $region23: #{tpu_custom_call.1} parent=1 // pred_check_branch
      %52 = sbr.rel (0) target = $region25
    $region24: #{tpu_custom_call.1} parent=1 // pred_region
      %53 = dma.done [#allocation3], 128
    $region25: #{tpu_custom_call.1} parent=1 // pred_fallthru
      _
    // Predicated region
    $region26: #{tpu_custom_call.1} parent=1 // pred_check
      _
    $region27: #{tpu_custom_call.1} parent=1 // pred_check_branch
      %55 = sbr.rel (0) target = $region29
    $region28: #{tpu_custom_call.1} parent=1 // pred_region
      %56 = dma.done [#allocation6], 2048
    $region29: #{tpu_custom_call.1} parent=1 // pred_fallthru
      _
    // Predicated region
    $region30: #{tpu_custom_call.1} parent=1 // pred_check
      _
    $region31: #{tpu_custom_call.1} parent=1 // pred_check_branch
      %58 = sbr.rel (0) target = $region33
    $region32: #{tpu_custom_call.1} parent=1 // pred_region
      %59 = dma.done [#allocation6], 2048
    $region33: #{tpu_custom_call.1} parent=1 // pred_fallthru
      _
    %v60 = vld [vmem:[#allocation2] sm:$0xff]
    %v61 = vld [vmem:[#allocation5] sm:$0xff]
    %v62 = vld [vmem:[#allocation5 + $0x8] sm:$0xff]
    %v63 = vld [vmem:[#allocation5 + $0x10] sm:$0xff]
    %v64 = vld [vmem:[#allocation5 + $0x18] sm:$0xff]
    %v65 = vld [vmem:[#allocation5 + $0x20] sm:$0xff]
    %v66 = vld [vmem:[#allocation5 + $0x28] sm:$0xff]
    %v67 = vld [vmem:[#allocation5 + $0x30] sm:$0xff]
    %v68 = vld [vmem:[#allocation5 + $0x38] sm:$0xff]
    %v69 = vld [vmem:[#allocation5 + $0x40] sm:$0xff]
    %v70 = vld [vmem:[#allocation5 + $0x48] sm:$0xff]
    %v71 = vld [vmem:[#allocation5 + $0x50] sm:$0xff]
    %v72 = vld [vmem:[#allocation5 + $0x58] sm:$0xff]
    %v73 = vld [vmem:[#allocation5 + $0x60] sm:$0xff]
    %v74 = vld [vmem:[#allocation5 + $0x68] sm:$0xff]
    %v75 = vld [vmem:[#allocation5 + $0x70] sm:$0xff]
    %v76 = vld [vmem:[#allocation5 + $0x78] sm:$0xff]
    %v77 = vld [vmem:[%s2] sm:$0x1]
    %v79 = vlaneseq
    %v80 = vshrl.u32 %v79, 7
    %v81 = vsub.s32 0, %v80
    %v82 = vrot.slane %v77, %v81
    %84 = vmatprep.subr.mxu0 0.0
    %85 = vmatpush1.msra.mxu0 %v61
    %86 = vmatprep.subr.mxu0 0.0
    %87 = vmatpush1.msra.mxu0 %v62
    %88 = vmatprep.subr.mxu0 0.0
    %89 = vmatpush1.msra.mxu0 %v63
    %90 = vmatprep.subr.mxu0 0.0
    %91 = vmatpush1.msra.mxu0 %v64
    %92 = vmatprep.subr.mxu0 0.0
    %93 = vmatpush1.msra.mxu0 %v65
    %94 = vmatprep.subr.mxu0 0.0
    %95 = vmatpush1.msra.mxu0 %v66
    %96 = vmatprep.subr.mxu0 0.0
    %97 = vmatpush1.msra.mxu0 %v67
    %98 = vmatprep.subr.mxu0 0.0
    %99 = vmatpush1.msra.mxu0 %v68
    %100 = vmatprep.subr.mxu0 0.0
    %101 = vmatpush1.msra.mxu0 %v69
    %102 = vmatprep.subr.mxu0 0.0
    %103 = vmatpush1.msra.mxu0 %v70
    %104 = vmatprep.subr.mxu0 0.0
    %105 = vmatpush1.msra.mxu0 %v71
    %106 = vmatprep.subr.mxu0 0.0
    %107 = vmatpush1.msra.mxu0 %v72
    %108 = vmatprep.subr.mxu0 0.0
    %109 = vmatpush1.msra.mxu0 %v73
    %110 = vmatprep.subr.mxu0 0.0
    %111 = vmatpush1.msra.mxu0 %v74
    %112 = vmatprep.subr.mxu0 0.0
    %113 = vmatpush1.msra.mxu0 %v75
    %114 = vmatprep.subr.mxu0 0.0
    %115 = vmatpush1.msra.mxu0 %v76
    %116 = vmatprep.subr.mxu0 0.0
    %117 = vmatpush1.msra.mxu0 0.0
    %118 = vmatprep.subr.mxu0 0.0
    %119 = vmatpush1.msra.mxu0 0.0
    %120 = vmatprep.subr.mxu0 0.0
    %121 = vmatpush1.msra.mxu0 0.0
    %122 = vmatprep.subr.mxu0 0.0
    %123 = vmatpush1.msra.mxu0 0.0
    %124 = vmatprep.subr.mxu0 0.0
    %125 = vmatpush1.msra.mxu0 0.0
    %126 = vmatprep.subr.mxu0 0.0
    %127 = vmatpush1.msra.mxu0 0.0
    %128 = vmatprep.subr.mxu0 0.0
    %129 = vmatpush1.msra.mxu0 0.0
    %130 = vmatprep.subr.mxu0 0.0
    %131 = vmatpush1.msra.mxu0 0.0
    %132 = vmatprep.subr.mxu0 0.0
    %133 = vmatpush1.msra.mxu0 0.0
    %134 = vmatprep.subr.mxu0 0.0
    %135 = vmatpush1.msra.mxu0 0.0
    %136 = vmatprep.subr.mxu0 0.0
    %137 = vmatpush1.msra.mxu0 0.0
    %138 = vmatprep.subr.mxu0 0.0
    %139 = vmatpush1.msra.mxu0 0.0
    %140 = vmatprep.subr.mxu0 0.0
    %141 = vmatpush1.msra.mxu0 0.0
    %142 = vmatprep.subr.mxu0 0.0
    %143 = vmatpush1.msra.mxu0 0.0
    %144 = vmatprep.subr.mxu0 0.0
    %145 = vmatpush1.msra.mxu0 0.0
    %146 = vmatprep.subr.mxu0 0.0
    %147 = vmatpush1.msra.mxu0 0.0
    %148 = vmatprep.mubr.f32.mxu0 0.0
    %149 = vmatmul.mubr.f32.gmra.mrb[0].mxu0 %v60
    %v150 = vpop.f32.mrb[0].mxu0
    %v151 = vadd.f32 %v82, %v150
    %v152 = vpop.f32.mrb[0].mxu0
    %153 = vdwg.mxu0
    %v154 = vmax.f32 %v151, 0.0
    %v155 = vld [vmem:[#allocation7] sm:$0xff]
    %v156 = vld [vmem:[#allocation7 + $0x8] sm:$0xff]
    %v157 = vld [vmem:[#allocation7 + $0x10] sm:$0xff]
    %v158 = vld [vmem:[#allocation7 + $0x18] sm:$0xff]
    %v159 = vld [vmem:[#allocation7 + $0x20] sm:$0xff]
    %v160 = vld [vmem:[#allocation7 + $0x28] sm:$0xff]
    %v161 = vld [vmem:[#allocation7 + $0x30] sm:$0xff]
    %v162 = vld [vmem:[#allocation7 + $0x38] sm:$0xff]
    %v163 = vld [vmem:[#allocation7 + $0x40] sm:$0xff]
    %v164 = vld [vmem:[#allocation7 + $0x48] sm:$0xff]
    %v165 = vld [vmem:[#allocation7 + $0x50] sm:$0xff]
    %v166 = vld [vmem:[#allocation7 + $0x58] sm:$0xff]
    %v167 = vld [vmem:[#allocation7 + $0x60] sm:$0xff]
    %v168 = vld [vmem:[#allocation7 + $0x68] sm:$0xff]
    %v169 = vld [vmem:[#allocation7 + $0x70] sm:$0xff]
    %v170 = vld [vmem:[#allocation7 + $0x78] sm:$0xff]
    %v171 = vld [vmem:[%s4] sm:$0x1]
    %v173 = vlaneseq
    %v174 = vshrl.u32 %v173, 7
    %v175 = vsub.s32 0, %v174
    %v176 = vrot.slane %v171, %v175
    %178 = vmatprep.subr.mxu0 0.0
    %179 = vmatpush1.msra.mxu0 %v155
    %180 = vmatprep.subr.mxu0 0.0
    %181 = vmatpush1.msra.mxu0 %v156
    %182 = vmatprep.subr.mxu0 0.0
    %183 = vmatpush1.msra.mxu0 %v157
    %184 = vmatprep.subr.mxu0 0.0
    %185 = vmatpush1.msra.mxu0 %v158
    %186 = vmatprep.subr.mxu0 0.0
    %187 = vmatpush1.msra.mxu0 %v159
    %188 = vmatprep.subr.mxu0 0.0
    %189 = vmatpush1.msra.mxu0 %v160
    %190 = vmatprep.subr.mxu0 0.0
    %191 = vmatpush1.msra.mxu0 %v161
    %192 = vmatprep.subr.mxu0 0.0
    %193 = vmatpush1.msra.mxu0 %v162
    %194 = vmatprep.subr.mxu0 0.0
    %195 = vmatpush1.msra.mxu0 %v163
    %196 = vmatprep.subr.mxu0 0.0
    %197 = vmatpush1.msra.mxu0 %v164
    %198 = vmatprep.subr.mxu0 0.0
    %199 = vmatpush1.msra.mxu0 %v165
    %200 = vmatprep.subr.mxu0 0.0
    %201 = vmatpush1.msra.mxu0 %v166
    %202 = vmatprep.subr.mxu0 0.0
    %203 = vmatpush1.msra.mxu0 %v167
    %204 = vmatprep.subr.mxu0 0.0
    %205 = vmatpush1.msra.mxu0 %v168
    %206 = vmatprep.subr.mxu0 0.0
    %207 = vmatpush1.msra.mxu0 %v169
    %208 = vmatprep.subr.mxu0 0.0
    %209 = vmatpush1.msra.mxu0 %v170
    %210 = vmatprep.subr.mxu0 0.0
    %211 = vmatpush1.msra.mxu0 0.0
    %212 = vmatprep.subr.mxu0 0.0
    %213 = vmatpush1.msra.mxu0 0.0
    %214 = vmatprep.subr.mxu0 0.0
    %215 = vmatpush1.msra.mxu0 0.0
    %216 = vmatprep.subr.mxu0 0.0
    %217 = vmatpush1.msra.mxu0 0.0
    %218 = vmatprep.subr.mxu0 0.0
    %219 = vmatpush1.msra.mxu0 0.0
    %220 = vmatprep.subr.mxu0 0.0
    %221 = vmatpush1.msra.mxu0 0.0
    %222 = vmatprep.subr.mxu0 0.0
    %223 = vmatpush1.msra.mxu0 0.0
    %224 = vmatprep.subr.mxu0 0.0
    %225 = vmatpush1.msra.mxu0 0.0
    %226 = vmatprep.subr.mxu0 0.0
    %227 = vmatpush1.msra.mxu0 0.0
    %228 = vmatprep.subr.mxu0 0.0
    %229 = vmatpush1.msra.mxu0 0.0
    %230 = vmatprep.subr.mxu0 0.0
    %231 = vmatpush1.msra.mxu0 0.0
    %232 = vmatprep.subr.mxu0 0.0
    %233 = vmatpush1.msra.mxu0 0.0
    %234 = vmatprep.subr.mxu0 0.0
    %235 = vmatpush1.msra.mxu0 0.0
    %236 = vmatprep.subr.mxu0 0.0
    %237 = vmatpush1.msra.mxu0 0.0
    %238 = vmatprep.subr.mxu0 0.0
    %239 = vmatpush1.msra.mxu0 0.0
    %240 = vmatprep.subr.mxu0 0.0
    %241 = vmatpush1.msra.mxu0 0.0
    %242 = vmatprep.mubr.f32.mxu0 0.0
    %243 = vmatmul.mubr.f32.gmra.mrb[0].mxu0 %v154
    %v244 = vpop.f32.mrb[0].mxu0
    %v245 = vadd.f32 %v176, %v244
    %v246 = vpop.f32.mrb[0].mxu0
    %247 = vdwg.mxu0
    %248 = vst [vmem:[#allocation8] sm:$0xff] %v245
    // Predicated region
    $region34: #{tpu_custom_call.1} parent=1 // pred_check
      _
    $region35: #{tpu_custom_call.1} parent=1 // pred_check_branch
      %250 = sbr.rel (0) target = $region37
    $region36: #{tpu_custom_call.1} parent=1 // pred_region
      %s252 = ssub.s32 128, 128
      %253 = vsyncadd [#allocation4], %s252
      %s255 = sshll.u32 [#allocation8], 4
      %s256 = int_to_ptr.vmem [resolvable:$true] %s255
      %258 = dma.vmem_to_hbm [thread:$0]  %s256, 128, %s5, [#allocation4]
    $region37: #{tpu_custom_call.1} parent=1 // pred_fallthru
      _
    // Predicated region
    $region38: #{tpu_custom_call.1} parent=1 // pred_check
      _
    $region39: #{tpu_custom_call.1} parent=1 // pred_check_branch
      %260 = sbr.rel (0) target = $region41
    $region40: #{tpu_custom_call.1} parent=1 // pred_region
      %261 = dma.done [#allocation4], 128
    $region41: #{tpu_custom_call.1} parent=1 // pred_fallthru
      _
    %262 = vsyncpa [#allocation3], 1
    %263 = vsyncpa [#allocation6], 1
    %264 = vsyncpa [#allocation4], 1

</llo_original>
